<compile_context>
chip_gen: v7x
topology: tpu7x:2x2x1
jax: 0.10.0
libtpu: 0.0.40
codegen_flags: <defaults>
</compile_context>

<pallas_src>
import jax
import jax.numpy as jnp
from jax.experimental import pallas as pl
from jax.experimental.pallas import tpu as pltpu


def _copy_kernel(x_ref, o_ref):
    # Copy one contiguous, lane-dense block of the flattened tensor.
    o_ref[...] = x_ref[...]


def _vmem_capacity_bytes():
    """Trace-time VMEM capacity query with a conservative fallback."""
    try:
        return int(pltpu.get_tpu_info().vmem_capacity_bytes)
    except Exception:
        return 64 * 1024 * 1024  # conservative: v7x per-TC VMEM


def _sublane_quantum(itemsize):
    # Packed sublane tile: (8,128) f32, (16,128) bf16, (32,128) int8/fp8.
    return max(8, 32 // max(1, itemsize))


def _choose_lane(total):
    """Largest multiple of 128 (capped at 4096) that divides `total`."""
    for lane in (4096, 2048, 1024, 512, 256, 128):
        if total % lane == 0:
            return lane
    return None


def _choose_rows(rows, row_bytes, target_bytes, quantum):
    """Sublane block extent R: ~target_bytes per block, multiple of the dtype
    packed quantum (or the full `rows` extent), preferring exact divisors."""
    r_target = max(1, target_bytes // row_bytes)
    if rows <= r_target:
        return rows  # whole extent in one block (always layout-legal)
    r = (r_target // quantum) * quantum
    while r >= quantum:
        if rows % r == 0:
            return r  # exact divisor -> no masked last block
        r -= quantum
    # No quantum-multiple divisor <= target: quantum-multiple tile + cdiv grid
    # (only the final block is masked).
    return min(rows, max(quantum, (r_target // quantum) * quantum))


def _make_in_spec(block_shape, index_map, n_blocks):
    """Input BlockSpec; request 3-deep buffering on long grids (pure-copy
    kernels have both DMA directions exposed)."""
    if n_blocks >= 3:
        try:
            return pl.BlockSpec(block_shape, index_map,
                                pipeline_mode=pl.Buffered(3))
        except (TypeError, AttributeError):
            pass
    return pl.BlockSpec(block_shape, index_map)


def _vmem_limit(block_bytes):
    """Scoped-VMEM request: enough for 3-in + 2-out buffers plus slack, capped
    below the physical per-core capacity of the current generation."""
    cap = max(8 * 1024 * 1024, _vmem_capacity_bytes() - 4 * 1024 * 1024)
    need = 8 * block_bytes + 2 * 1024 * 1024
    return min(cap, max(16 * 1024 * 1024, need))


def _materialized_copy(x2d, target_block_bytes):
    n, flat = x2d.shape
    total = n * flat
    itemsize = jnp.dtype(x2d.dtype).itemsize
    quantum = _sublane_quantum(itemsize)
    lane = _choose_lane(total)

    if lane is None:
        # Element count not a multiple of 128: keep the (n, flat) layout
        # (full-extent last dim is layout-legal) and tile the batch axis so
        # the copy stays pipelined instead of loading everything in one block.
        r_blk = _choose_rows(n, flat * itemsize, target_block_bytes, quantum)
        grid = (pl.cdiv(n, r_blk),)
        block_bytes = r_blk * flat * itemsize
        return pl.pallas_call(
            _copy_kernel,
            out_shape=jax.ShapeDtypeStruct((n, flat), x2d.dtype),
            grid=grid,
            in_specs=[_make_in_spec((r_blk, flat), lambda i: (i, 0), grid[0])],
            out_specs=pl.BlockSpec((r_blk, flat), lambda i: (i, 0)),
            compiler_params=pltpu.CompilerParams(
                dimension_semantics=("parallel",),
                vmem_limit_bytes=_vmem_limit(block_bytes),
            ),
        )(x2d)

    rows = total // lane
    # Free metadata reshape to a contiguous lane-dense 2D slab.
    x_slab = x2d.reshape(rows, lane)
    r_blk = _choose_rows(rows, lane * itemsize, target_block_bytes, quantum)
    grid = (pl.cdiv(rows, r_blk),)
    block_bytes = r_blk * lane * itemsize

    out = pl.pallas_call(
        _copy_kernel,
        out_shape=jax.ShapeDtypeStruct((rows, lane), x2d.dtype),
        grid=grid,
        in_specs=[_make_in_spec((r_blk, lane), lambda i: (i, 0), grid[0])],
        out_specs=pl.BlockSpec((r_blk, lane), lambda i: (i, 0)),
        compiler_params=pltpu.CompilerParams(
            # A single "parallel" row-block axis lets Mosaic shard the grid
            # across both TensorCores on v7x; no-op on v5e/v6e (1 TC).
            dimension_semantics=("parallel",),
            vmem_limit_bytes=_vmem_limit(block_bytes),
        ),
    )(x_slab)

    # Free reshape back to the Flatten output shape.
    return out.reshape(n, flat)


def flatten(x, *, materialize=False, target_block_bytes=4 * 1024 * 1024):
    """Pallas equivalent of Flatten.forward: (N, ...) -> (N, prod(...)).

    With materialize=False (default) this is a zero-cost metadata reshape,
    which is exactly torch .view on a contiguous tensor and the fastest
    possible Flatten.  materialize=True forces an explicit HBM copy through
    the Pallas kernel (useful only when a fresh buffer is strictly required).
    """
    n = x.shape[0]
    flat = 1
    for d in x.shape[1:]:
        flat *= d
    x2d = x.reshape(n, flat)  # this alone already implements Flatten
    if not materialize:
        return x2d
    return _materialized_copy(x2d, target_block_bytes)


if __name__ == "__main__":
    key = jax.random.PRNGKey(0)

    # Small NCHW input consistent with a conv feature map: N=2, C=4, H=W=16.
    x = jax.random.normal(key, (2, 4, 16, 16), dtype=jnp.float32)
    ref = x.reshape(x.shape[0], -1)

    # Default path: pure metadata reshape (no kernel, zero HBM traffic).
    y_view = flatten(x)
    jax.block_until_ready(y_view)
    assert y_view.shape == (2, 4 * 16 * 16), y_view.shape
    assert bool(jnp.array_equal(y_view, ref)), "view-path mismatch"

    # Materialized path: lane-dense Pallas copy kernel.
    y_mat = flatten(x, materialize=True)
    jax.block_until_ready(y_mat)
    assert y_mat.shape == (2, 4 * 16 * 16), y_mat.shape
    assert y_mat.dtype == x.dtype
    assert bool(jnp.array_equal(y_mat, ref)), "materialized flatten mismatch"

    # Odd-shaped input (element count not a multiple of 128) exercises the
    # tiled full-extent-last-dim fallback.
    x_odd = jax.random.normal(jax.random.PRNGKey(0), (2, 3, 5, 7),
                              dtype=jnp.float32)
    y_odd = flatten(x_odd, materialize=True)
    jax.block_until_ready(y_odd)
    assert bool(jnp.array_equal(y_odd, x_odd.reshape(2, -1))), "fallback mismatch"

    print("KERNEL_OK")
</pallas_src>

<mosaic_0001>
module attributes {stable_mosaic.version = 11 : i64} {
  func.func @_copy_kernel(%arg0: i32, %arg1: memref<1x2048xf32, #tpu.memory_space<vmem>>, %arg2: memref<1x2048xf32, #tpu.memory_space<vmem>>) attributes {dimension_semantics = [#tpu.dimension_semantics<parallel>], iteration_bounds = array<i64: 1>, scalar_prefetch = 0 : i64, scratch_operands = 0 : i64, tpu.core_type = #tpu.core_type<tc>, window_params = [{transform_indices = @transform_0, window_bounds = array<i64: 1, 2048>}, {transform_indices = @transform_1, window_bounds = array<i64: 1, 2048>}]} {
    %c0 = arith.constant 0 : index
    %c0_0 = arith.constant 0 : index
    %0 = vector.load %arg1[%c0, %c0_0] : memref<1x2048xf32, #tpu.memory_space<vmem>>, vector<1x2048xf32>
    %c0_1 = arith.constant 0 : index
    %c0_2 = arith.constant 0 : index
    %1 = vector.load %arg2[%c0_1, %c0_2] : memref<1x2048xf32, #tpu.memory_space<vmem>>, vector<1x2048xf32>
    tpu.vector_store %arg2[%c0_1, %c0_2], %0 {strides = array<i32>} : memref<1x2048xf32, #tpu.memory_space<vmem>>, vector<1x2048xf32>,
    return
  }
  func.func @transform_0(%arg0: i32) -> (i32, i32) {
    %c0_i32 = arith.constant 0 : i32
    %c0_i32_0 = arith.constant 0 : i32
    return %arg0, %c0_i32 : i32, i32
  }
  func.func @transform_1(%arg0: i32) -> (i32, i32) {
    %c0_i32 = arith.constant 0 : i32
    %c0_i32_0 = arith.constant 0 : i32
    return %arg0, %c0_i32 : i32, i32
  }
}

</mosaic_0001>

<llo_original>
// kernel: tpu_custom_call.1
$region0: #{tpu_custom_call.1}
  #allocation0 [shape = 'u32[]', space=smem, size = 0x4, offset = 0x4, fixed_abs, tag = 'smem constant byte address 0x4 - core index']
  #allocation1 [shape = 'u32[144,128]{1,0:T(1,128)}', space=vmem, size = 0x12000, scoped, tag = 'internal scratch']
  %s0 = inlined_call_operand.hbm [shape: f32[1,2048], index: 0, kind: input, shape index: {}]
  %s1 = inlined_call_operand.hbm [shape: f32[1,2048], index: 1, kind: output, shape index: {}]
  %s2 = sld [smem:[#allocation0]]
  $region18: #{tpu_custom_call.1} parent=0
    _
  %s4 = ssub.s32 1, %s2
  %s5 = scalar_select 0, %s4, %s2
  $region1: #{tpu_custom_call.1} parent=0
    #allocation2 [shape = 'u8[8192]{0}', space=vmem, size = 0x2000, scoped, tag = 'input window, operand 0, single buffered']
    #allocation3 [shape = 's32[1]{0}', space=sflag, size = 0x4, scoped, tag = 'scoped memory for tpu_custom_call.1']
    #allocation4 [shape = 's32[1]{0}', space=sflag, size = 0x4, scoped, tag = 'scoped memory for tpu_custom_call.1']
    #allocation5 [shape = 'u8[8192]{0}', space=vmem, size = 0x2000, scoped, tag = 'output window, operand 0, single buffered']
    %6 = vsyncpa [#allocation3], 0
    %7 = vsyncpa [#allocation4], 0
    // Predicated region
    $region2: #{tpu_custom_call.1} parent=1 // pred_check
      _
    $region3: #{tpu_custom_call.1} parent=1 // pred_check_branch
      %9 = sbr.rel (0) target = $region5
    $region4: #{tpu_custom_call.1} parent=1 // pred_region
      %s11 = ssub.s32 256, 256
      %12 = vsyncadd [#allocation3], %s11
      %s14 = sshll.u32 [#allocation2], 4
      %s15 = int_to_ptr.vmem [resolvable:$true] %s14
      %17 = dma.hbm_to_vmem [thread:$0]  %s0, 256, %s15, [#allocation3]
    $region5: #{tpu_custom_call.1} parent=1 // pred_fallthru
      _
    // Predicated region
    $region6: #{tpu_custom_call.1} parent=1 // pred_check
      _
    $region7: #{tpu_custom_call.1} parent=1 // pred_check_branch
      %19 = sbr.rel (0) target = $region9
    $region8: #{tpu_custom_call.1} parent=1 // pred_region
      %20 = dma.done [#allocation3], 256
    $region9: #{tpu_custom_call.1} parent=1 // pred_fallthru
      _
    %v21 = vld [vmem:[#allocation2] sm:$0xff]
    %v22 = vld [vmem:[#allocation2 + $0x8] sm:$0xff]
    %23 = vst [vmem:[#allocation5] sm:$0xff] %v21
    %24 = vst [vmem:[#allocation5 + $0x8] sm:$0xff] %v22
    // Predicated region
    $region10: #{tpu_custom_call.1} parent=1 // pred_check
      _
    $region11: #{tpu_custom_call.1} parent=1 // pred_check_branch
      %26 = sbr.rel (0) target = $region13
    $region12: #{tpu_custom_call.1} parent=1 // pred_region
      %s28 = ssub.s32 256, 256
      %29 = vsyncadd [#allocation4], %s28
      %s31 = sshll.u32 [#allocation5], 4
      %s32 = int_to_ptr.vmem [resolvable:$true] %s31
      %34 = dma.vmem_to_hbm [thread:$0]  %s32, 256, %s1, [#allocation4]
    $region13: #{tpu_custom_call.1} parent=1 // pred_fallthru
      _
    // Predicated region
    $region14: #{tpu_custom_call.1} parent=1 // pred_check
      _
    $region15: #{tpu_custom_call.1} parent=1 // pred_check_branch
      %36 = sbr.rel (0) target = $region17
    $region16: #{tpu_custom_call.1} parent=1 // pred_region
      %37 = dma.done [#allocation4], 256
    $region17: #{tpu_custom_call.1} parent=1 // pred_fallthru
      _
    %38 = vsyncpa [#allocation3], 1
    %39 = vsyncpa [#allocation4], 1

</llo_original>
